<compile_context>
chip_gen: v7x
topology: tpu7x:2x2x1
jax: 0.10.0
libtpu: 0.0.40
codegen_flags: <defaults>
</compile_context>

<pallas_src>
import jax
import jax.numpy as jnp
from jax.experimental import pallas as pl
from jax.experimental.pallas import tpu as pltpu


def _focus_conv_kernel(x_ref, w_ref, b_ref, o_ref):
    # x_ref: (4C, TN) activations tile    w_ref: (C2, 4C) BN-folded 1x1 weights
    # b_ref: (C2, 1)  BN-folded bias      o_ref: (C2, TN) output tile
    x = x_ref[...].astype(jnp.float32)
    z = jnp.dot(w_ref[...], x, preferred_element_type=jnp.float32)
    z = z + b_ref[...]
    # SiLU(z) = z * sigmoid(z); exp and the approximate reciprocal both go to
    # the EUP slot (free filler on an HBM-bound kernel).
    sig = pl.reciprocal(1.0 + jnp.exp(-z), approx=True)
    o_ref[...] = (z * sig).astype(o_ref.dtype)


def _round_up(a, b):
    return (a + b - 1) // b * b


def focus_forward(x, conv_w, bn_gamma, bn_beta, bn_mean, bn_var, eps=1e-5,
                  *, lane_tile=8192, channels_major_out=False):
    """Focus.forward with the module defaults (k=1, s=1, p=0, g=1, act=SiLU).

    x:       (N, C, H, W)
    conv_w:  (C2, 4*C, 1, 1)   (Conv2d weight, no bias)
    bn_*:    (C2,)             (BatchNorm2d inference parameters)
    returns  (N, C2, H//2, W//2)   (or (C2, N*H2*W2) if channels_major_out)
    """
    N, C, H, W = x.shape
    assert H % 2 == 0 and W % 2 == 0, "Focus requires even H, W"
    C2 = conv_w.shape[0]
    C4 = 4 * C
    # TODO(synk): only the default 1x1 / stride-1 / groups=1 conv is lowered
    # to Pallas; general k/s/g would need an im2col or windowed-conv kernel.
    assert conv_w.shape == (C2, C4, 1, 1)
    H2, W2 = H // 2, W // 2
    total = N * H2 * W2

    # ---- space-to-depth: cat([::2,::2], [1::2,::2], [::2,1::2], [1::2,1::2])
    # Pure layout plumbing; allow_input_fusion below lets XLA fuse these
    # slices / concat / transpose / pad into the kernel's input DMA instead of
    # materializing xc / x2d in HBM.
    xc = jnp.concatenate(
        [x[:, :, ::2, ::2], x[:, :, 1::2, ::2],
         x[:, :, ::2, 1::2], x[:, :, 1::2, 1::2]], axis=1)        # (N, 4C, H2, W2)
    x2d = xc.transpose(1, 0, 2, 3).reshape(C4, total)             # (4C, N*H2*W2)

    # ---- fold BatchNorm (inference) into the 1x1-conv weights / bias (f32)
    scale = (bn_gamma / jnp.sqrt(bn_var + eps)).astype(jnp.float32)      # (C2,)
    w2d = conv_w.reshape(C2, C4).astype(jnp.float32) * scale[:, None]    # (C2, 4C)
    bias = (bn_beta.astype(jnp.float32)
            - bn_mean.astype(jnp.float32) * scale).reshape(C2, 1)        # (C2, 1)

    out_dtype = x.dtype
    in_itemsize = jnp.dtype(x.dtype).itemsize
    out_itemsize = jnp.dtype(out_dtype).itemsize

    # ---- lane padding (multiple of 128) and lane-tile choice
    padded = _round_up(total, 128)
    tn = min(padded, _round_up(lane_tile, 128))
    # Cap the tile so the double-buffered in+out tiles stay under ~24 MiB
    # (safe on v5e scoped default with headroom and on v7x's 64 MiB VMEM).
    budget = 24 << 20
    while (tn > 128 and tn % 256 == 0
           and 2 * tn * (C4 * in_itemsize + C2 * out_itemsize) > budget):
        tn //= 2
    padded = _round_up(padded, tn)
    # v7x megacore balance: avoid a 1-3 step grid when there is enough work
    # (keep tiles >= 2048 lanes so per-step overhead stays negligible).
    while padded // tn < 8 and tn > 2048 and tn % 256 == 0:
        tn //= 2
    if padded != total:
        # Zero-pad the tail; fuses into the input DMA with allow_input_fusion.
        # Padded columns only produce SiLU(bias) values that are sliced off.
        x2d = jnp.pad(x2d, ((0, 0), (0, padded - total)))

    grid = (padded // tn,)

    # Explicit VMEM limit with headroom (double-buffered tiles + weights).
    vmem_est = (2 * tn * (C4 * in_itemsize + C2 * out_itemsize)
                + 2 * (C2 * C4 + C2) * 4)
    vmem_limit = int(min(max(2 * vmem_est + (4 << 20), 16 << 20), 48 << 20))

    out2d = pl.pallas_call(
        _focus_conv_kernel,
        out_shape=jax.ShapeDtypeStruct((C2, padded), out_dtype),
        grid_spec=pltpu.PrefetchScalarGridSpec(
            num_scalar_prefetch=0,
            grid=grid,
            in_specs=[
                pl.BlockSpec((C4, tn), lambda j: (0, j)),   # activations tile
                pl.BlockSpec((C2, C4), lambda j: (0, 0)),   # weights (resident)
                pl.BlockSpec((C2, 1), lambda j: (0, 0)),    # bias (resident)
            ],
            out_specs=pl.BlockSpec((C2, tn), lambda j: (0, j)),
        ),
        compiler_params=pltpu.CompilerParams(
            dimension_semantics=("parallel",),
            allow_input_fusion=[True, False, False],
            vmem_limit_bytes=vmem_limit,
        ),
    )(x2d, w2d, bias)

    out2d = out2d[:, :total]
    if channels_major_out:
        # Channels-major (C2, N*H2*W2): lets the consumer fuse the layout
        # change instead of paying an extra full HBM pass here.
        return out2d
    return out2d.reshape(C2, N, H2, W2).transpose(1, 0, 2, 3)


def _reference(x, conv_w, gamma, beta, mean, var, eps=1e-5):
    # Pure-JAX reference matching Focus.forward (Conv2d 1x1 + BN(eval) + SiLU).
    xc = jnp.concatenate(
        [x[:, :, ::2, ::2], x[:, :, 1::2, ::2],
         x[:, :, ::2, 1::2], x[:, :, 1::2, 1::2]], axis=1)
    w2d = conv_w.reshape(conv_w.shape[0], -1)
    z = jnp.einsum('oc,nchw->nohw', w2d, xc)
    z = (z - mean[None, :, None, None]) / jnp.sqrt(var + eps)[None, :, None, None]
    z = z * gamma[None, :, None, None] + beta[None, :, None, None]
    return z * jax.nn.sigmoid(z)


if __name__ == "__main__":
    key = jax.random.PRNGKey(0)
    k1, k2, k3, k4, k5, k6 = jax.random.split(key, 6)

    N, C1, H, W = 2, 4, 16, 16
    C2 = 8

    x = jax.random.normal(k1, (N, C1, H, W), dtype=jnp.float32)
    conv_w = jax.random.normal(k2, (C2, 4 * C1, 1, 1), dtype=jnp.float32) * 0.1
    gamma = 1.0 + 0.1 * jax.random.normal(k3, (C2,), dtype=jnp.float32)
    beta = 0.1 * jax.random.normal(k4, (C2,), dtype=jnp.float32)
    mean = 0.1 * jax.random.normal(k5, (C2,), dtype=jnp.float32)
    var = jax.nn.softplus(jax.random.normal(k6, (C2,), dtype=jnp.float32)) + 0.5

    out = focus_forward(x, conv_w, gamma, beta, mean, var)
    jax.block_until_ready(out)

    ref = _reference(x, conv_w, gamma, beta, mean, var)
    assert out.shape == (N, C2, H // 2, W // 2)
    # Tolerance accounts for the EUP approximate reciprocal in SiLU
    # (relative error ~1e-3); real bugs (e.g. wrong BN fold) would be >> this.
    assert jnp.allclose(out, ref, atol=1e-2, rtol=1e-2), (
        float(jnp.max(jnp.abs(out - ref))))

    print("KERNEL_OK")
</pallas_src>

<mosaic_0001>
module attributes {stable_mosaic.version = 11 : i64} {
  func.func @_focus_conv_kernel(%arg0: i32, %arg1: memref<16x128xf32, #tpu.memory_space<vmem>>, %arg2: memref<8x16xf32, #tpu.memory_space<vmem>>, %arg3: memref<8x1xf32, #tpu.memory_space<vmem>>, %arg4: memref<8x128xf32, #tpu.memory_space<vmem>>) attributes {dimension_semantics = [#tpu.dimension_semantics<parallel>], iteration_bounds = array<i64: 1>, scalar_prefetch = 0 : i64, scratch_operands = 0 : i64, tpu.core_type = #tpu.core_type<tc>, window_params = [{transform_indices = @transform_0, window_bounds = array<i64: 16, 128>}, {pipeline_mode = #tpu.pipeline_mode<synchronous>, transform_indices = @transform_1, window_bounds = array<i64: 8, 16>}, {pipeline_mode = #tpu.pipeline_mode<synchronous>, transform_indices = @transform_2, window_bounds = array<i64: 8, 1>}, {transform_indices = @transform_3, window_bounds = array<i64: 8, 128>}]} {
    %c0 = arith.constant 0 : index
    %c0_0 = arith.constant 0 : index
    %0 = vector.load %arg1[%c0, %c0_0] : memref<16x128xf32, #tpu.memory_space<vmem>>, vector<16x128xf32>
    %c0_1 = arith.constant 0 : index
    %c0_2 = arith.constant 0 : index
    %1 = vector.load %arg2[%c0_1, %c0_2] : memref<8x16xf32, #tpu.memory_space<vmem>>, vector<8x16xf32>
    %cst = arith.constant dense<0.000000e+00> : vector<8x128xf32>
    %2 = tpu.matmul %1, %0, %cst {dimension_numbers = #tpu.dot_dimension_numbers<[1], [0], [0], [1], [0, 0, 1, 1], [], []>} : vector<8x16xf32>, vector<16x128xf32>, vector<8x128xf32> -> vector<8x128xf32>
    %c0_3 = arith.constant 0 : index
    %c0_4 = arith.constant 0 : index
    %3 = vector.load %arg3[%c0_3, %c0_4] : memref<8x1xf32, #tpu.memory_space<vmem>>, vector<8x1xf32>
    %4 = vector.broadcast %3 : vector<8x1xf32> to vector<8x128xf32>
    %5 = arith.addf %2, %4 : vector<8x128xf32>
    %cst_5 = arith.constant 0.000000e+00 : f32
    %6 = vector.broadcast %cst_5 : f32 to vector<8x128xf32>
    %7 = arith.subf %6, %5 : vector<8x128xf32>
    %8 = math.exp %7 : vector<8x128xf32>
    %cst_6 = arith.constant 1.000000e+00 : f32
    %9 = vector.broadcast %cst_6 : f32 to vector<8x128xf32>
    %10 = arith.addf %9, %8 : vector<8x128xf32>
    %11 = tpu.reciprocal %10 {approx = true} : vector<8x128xf32> -> vector<8x128xf32>
    %12 = arith.mulf %5, %11 : vector<8x128xf32>
    %c0_7 = arith.constant 0 : index
    %c0_8 = arith.constant 0 : index
    %13 = vector.load %arg4[%c0_7, %c0_8] : memref<8x128xf32, #tpu.memory_space<vmem>>, vector<8x128xf32>
    tpu.vector_store %arg4[%c0_7, %c0_8], %12 {strides = array<i32>} : memref<8x128xf32, #tpu.memory_space<vmem>>, vector<8x128xf32>,
    return
  }
  func.func @transform_0(%arg0: i32) -> (i32, i32) {
    %c0_i32 = arith.constant 0 : i32
    %c0_i32_0 = arith.constant 0 : i32
    return %c0_i32, %arg0 : i32, i32
  }
  func.func @transform_1(%arg0: i32) -> (i32, i32) {
    %c0_i32 = arith.constant 0 : i32
    %c0_i32_0 = arith.constant 0 : i32
    %c0_i32_1 = arith.constant 0 : i32
    return %c0_i32, %c0_i32_0 : i32, i32
  }
  func.func @transform_2(%arg0: i32) -> (i32, i32) {
    %c0_i32 = arith.constant 0 : i32
    %c0_i32_0 = arith.constant 0 : i32
    %c0_i32_1 = arith.constant 0 : i32
    return %c0_i32, %c0_i32_0 : i32, i32
  }
  func.func @transform_3(%arg0: i32) -> (i32, i32) {
    %c0_i32 = arith.constant 0 : i32
    %c0_i32_0 = arith.constant 0 : i32
    return %c0_i32, %arg0 : i32, i32
  }
}

</mosaic_0001>

<llo_original>
// kernel: tpu_custom_call.1
$region0: #{tpu_custom_call.1}
  #allocation0 [shape = 'u32[]', space=smem, size = 0x4, offset = 0x4, fixed_abs, tag = 'smem constant byte address 0x4 - core index']
  #allocation1 [shape = 'u32[144,128]{1,0:T(1,128)}', space=vmem, size = 0x12000, scoped, tag = 'internal scratch']
  %s0 = inlined_call_operand.hbm [shape: f32[16,128], index: 0, kind: input, shape index: {}]
  %s1 = inlined_call_operand.vmem [shape: f32[8,16], index: 1, kind: input, shape index: {}]
  %s2 = inlined_call_operand.vmem [shape: f32[8,1], index: 2, kind: input, shape index: {}]
  %s3 = inlined_call_operand.hbm [shape: f32[8,128], index: 3, kind: output, shape index: {}]
  %s4 = sld [smem:[#allocation0]]
  $region26: #{tpu_custom_call.1} parent=0
    _
  %s6 = ssub.s32 1, %s4
  %s7 = scalar_select 0, %s6, %s4
  $region1: #{tpu_custom_call.1} parent=0
    #allocation2 [shape = 'u8[8192]{0}', space=vmem, size = 0x2000, scoped, tag = 'input window, operand 0, single buffered']
    #allocation3 [shape = 's32[1]{0}', space=sflag, size = 0x4, scoped, tag = 'scoped memory for tpu_custom_call.1']
    #allocation4 [shape = 's32[1]{0}', space=sflag, size = 0x4, scoped, tag = 'scoped memory for tpu_custom_call.1']
    #allocation5 [shape = 'u8[4096]{0}', space=vmem, size = 0x1000, scoped, tag = 'output window, operand 0, single buffered']
    %8 = vsyncpa [#allocation3], 0
    %9 = vsyncpa [#allocation4], 0
    // Predicated region
    $region2: #{tpu_custom_call.1} parent=1 // pred_check
      _
    $region3: #{tpu_custom_call.1} parent=1 // pred_check_branch
      %11 = sbr.rel (0) target = $region5
    $region4: #{tpu_custom_call.1} parent=1 // pred_region
      %s13 = ssub.s32 256, 256
      %14 = vsyncadd [#allocation3], %s13
      %s15 = sshll.u32 [#allocation2], 4
      %s16 = int_to_ptr.vmem [resolvable:$true] %s15
      %21 = dma.hbm_to_vmem [thread:$0]  %s0, 256, %s16, [#allocation3], 128, 128, 8
    $region5: #{tpu_custom_call.1} parent=1 // pred_fallthru
      _
    // Predicated region
    $region6: #{tpu_custom_call.1} parent=1 // pred_check
      _
    $region7: #{tpu_custom_call.1} parent=1 // pred_check_branch
      %23 = sbr.rel (0) target = $region9
    $region8: #{tpu_custom_call.1} parent=1 // pred_region
      _
    $region9: #{tpu_custom_call.1} parent=1 // pred_fallthru
      _
    // Predicated region
    $region10: #{tpu_custom_call.1} parent=1 // pred_check
      _
    $region11: #{tpu_custom_call.1} parent=1 // pred_check_branch
      %25 = sbr.rel (0) target = $region13
    $region12: #{tpu_custom_call.1} parent=1 // pred_region
      _
    $region13: #{tpu_custom_call.1} parent=1 // pred_fallthru
      _
    // Predicated region
    $region14: #{tpu_custom_call.1} parent=1 // pred_check
      _
    $region15: #{tpu_custom_call.1} parent=1 // pred_check_branch
      %27 = sbr.rel (0) target = $region17
    $region16: #{tpu_custom_call.1} parent=1 // pred_region
      %28 = dma.done [#allocation3], 256
    $region17: #{tpu_custom_call.1} parent=1 // pred_fallthru
      _
    %v29 = vld [vmem:[#allocation2] sm:$0xff]
    %v30 = vld [vmem:[#allocation2 + $0x8] sm:$0xff]
    %v31 = vld [vmem:[%s1] sm:$0xff]
    %v32 = vld [vmem:[%s2] sm:$0xff]
    %34 = vset.pattern.permute.xlu0 0
    %35 = vperm.xlu0 %34, %v32
    %v36 = vpop.permute.xlu0 %35
    %vm38 = vcmask 130048
    %v40 = vsel %vm38, %v31, 0
    %42 = vmatprep.subr.mxu0 0.0
    %43 = vmatpush1.msra.mxu0 %v29
    %44 = vmatprep.subr.mxu0 0.0
    %45 = vmatpush1.msra.mxu0 %v30
    %46 = vmatprep.subr.mxu0 0.0
    %47 = vmatpush1.msra.mxu0 0.0
    %48 = vmatprep.subr.mxu0 0.0
    %49 = vmatpush1.msra.mxu0 0.0
    %50 = vmatprep.subr.mxu0 0.0
    %51 = vmatpush1.msra.mxu0 0.0
    %52 = vmatprep.subr.mxu0 0.0
    %53 = vmatpush1.msra.mxu0 0.0
    %54 = vmatprep.subr.mxu0 0.0
    %55 = vmatpush1.msra.mxu0 0.0
    %56 = vmatprep.subr.mxu0 0.0
    %57 = vmatpush1.msra.mxu0 0.0
    %58 = vmatprep.subr.mxu0 0.0
    %59 = vmatpush1.msra.mxu0 0.0
    %60 = vmatprep.subr.mxu0 0.0
    %61 = vmatpush1.msra.mxu0 0.0
    %62 = vmatprep.subr.mxu0 0.0
    %63 = vmatpush1.msra.mxu0 0.0
    %64 = vmatprep.subr.mxu0 0.0
    %65 = vmatpush1.msra.mxu0 0.0
    %66 = vmatprep.subr.mxu0 0.0
    %67 = vmatpush1.msra.mxu0 0.0
    %68 = vmatprep.subr.mxu0 0.0
    %69 = vmatpush1.msra.mxu0 0.0
    %70 = vmatprep.subr.mxu0 0.0
    %71 = vmatpush1.msra.mxu0 0.0
    %72 = vmatprep.subr.mxu0 0.0
    %73 = vmatpush1.msra.mxu0 0.0
    %74 = vmatprep.subr.mxu0 0.0
    %75 = vmatpush1.msra.mxu0 0.0
    %76 = vmatprep.subr.mxu0 0.0
    %77 = vmatpush1.msra.mxu0 0.0
    %78 = vmatprep.subr.mxu0 0.0
    %79 = vmatpush1.msra.mxu0 0.0
    %80 = vmatprep.subr.mxu0 0.0
    %81 = vmatpush1.msra.mxu0 0.0
    %82 = vmatprep.subr.mxu0 0.0
    %83 = vmatpush1.msra.mxu0 0.0
    %84 = vmatprep.subr.mxu0 0.0
    %85 = vmatpush1.msra.mxu0 0.0
    %86 = vmatprep.subr.mxu0 0.0
    %87 = vmatpush1.msra.mxu0 0.0
    %88 = vmatprep.subr.mxu0 0.0
    %89 = vmatpush1.msra.mxu0 0.0
    %90 = vmatprep.subr.mxu0 0.0
    %91 = vmatpush1.msra.mxu0 0.0
    %92 = vmatprep.subr.mxu0 0.0
    %93 = vmatpush1.msra.mxu0 0.0
    %94 = vmatprep.subr.mxu0 0.0
    %95 = vmatpush1.msra.mxu0 0.0
    %96 = vmatprep.subr.mxu0 0.0
    %97 = vmatpush1.msra.mxu0 0.0
    %98 = vmatprep.subr.mxu0 0.0
    %99 = vmatpush1.msra.mxu0 0.0
    %100 = vmatprep.subr.mxu0 0.0
    %101 = vmatpush1.msra.mxu0 0.0
    %102 = vmatprep.subr.mxu0 0.0
    %103 = vmatpush1.msra.mxu0 0.0
    %104 = vmatprep.subr.mxu0 0.0
    %105 = vmatpush1.msra.mxu0 0.0
    %106 = vmatprep.mubr.f32.mxu0 0.0
    %107 = vmatmul.mubr.f32.gmra.mrb[0].mxu0 %v40
    %v108 = vpop.f32.mrb[0].mxu0
    %v109 = vadd.f32 %v36, %v108
    %v110 = vpop.f32.mrb[0].mxu0
    %111 = vdwg.mxu0
    %v112 = vsub.f32 0.0, %v109
    %v113 = vmul.f32 %v112, 1.442695
    %v114 = vpow.pop %v113
    %v115 = vadd.f32 %v114, 1.0
    %v116 = vrcp.pop %v115
    %v117 = vmul.f32 %v109, %v116
    %118 = vst [vmem:[#allocation5] sm:$0xff] %v117
    // Predicated region
    $region18: #{tpu_custom_call.1} parent=1 // pred_check
      _
    $region19: #{tpu_custom_call.1} parent=1 // pred_check_branch
      %120 = sbr.rel (0) target = $region21
    $region20: #{tpu_custom_call.1} parent=1 // pred_region
      %s122 = ssub.s32 128, 128
      %123 = vsyncadd [#allocation4], %s122
      %s125 = sshll.u32 [#allocation5], 4
      %s126 = int_to_ptr.vmem [resolvable:$true] %s125
      %128 = dma.vmem_to_hbm [thread:$0]  %s126, 128, %s3, [#allocation4]
    $region21: #{tpu_custom_call.1} parent=1 // pred_fallthru
      _
    // Predicated region
    $region22: #{tpu_custom_call.1} parent=1 // pred_check
      _
    $region23: #{tpu_custom_call.1} parent=1 // pred_check_branch
      %130 = sbr.rel (0) target = $region25
    $region24: #{tpu_custom_call.1} parent=1 // pred_region
      %131 = dma.done [#allocation4], 128
    $region25: #{tpu_custom_call.1} parent=1 // pred_fallthru
      _
    %132 = vsyncpa [#allocation3], 1
    %133 = vsyncpa [#allocation4], 1

</llo_original>
